<compile_context>
chip_gen: v5e
topology: v5e:2x2
jax: 0.10.0
libtpu: 0.0.40
codegen_flags: <defaults>
</compile_context>

<pallas_src>
import math

import jax
import jax.numpy as jnp
from jax.experimental import pallas as pl
from jax.experimental.pallas import tpu as pltpu

# ----------------------------------------------------------------------------
# Synthetic irreps (mul, l) — parities assumed compatible for matching l.
# TODO(synk): honor parity when matching irreps for fully general e3nn inputs.
# ----------------------------------------------------------------------------
IRREPS_IN = [(8, 0), (4, 1), (2, 2)]    # dim = 8 + 4*3 + 2*5 = 30
IRREPS_OUT = [(16, 0), (8, 1), (4, 2)]  # dim = 16 + 8*3 + 4*5 = 60

KEY_NODE_FEATURE = "x"
KEY_SELF_CONNECTION_TEMP = "self_cont_tmp"

SUBLANE = 8      # TPU sublane width (second-to-last dim alignment, f32)
TILE_N = 8192    # node-tile rows (double-buffered x+out ~16 MiB worst case)


def _round_up(x, m):
    return ((x + m - 1) // m) * m


def _irreps_dim(irreps):
    return sum(mul * (2 * l + 1) for mul, l in irreps)


def _irreps_offsets(irreps):
    offs, o = [], 0
    for mul, l in irreps:
        offs.append(o)
        o += mul * (2 * l + 1)
    return offs


def build_dense_weight(key, irreps_in, irreps_out, dtype=jnp.float32):
    """Build the equivalent dense [dim_in, dim_out] matrix of an e3nn Linear."""
    din, dout = _irreps_dim(irreps_in), _irreps_dim(irreps_out)
    off_in, off_out = _irreps_offsets(irreps_in), _irreps_offsets(irreps_out)

    # fan_in per output irrep (path_normalization='element'):
    fan_in = []
    for mo, lo in irreps_out:
        fan_in.append(sum(mi for mi, li in irreps_in if li == lo))

    m = jnp.zeros((din, dout), dtype=dtype)
    for j, (mo, lo) in enumerate(irreps_out):
        for i, (mi, li) in enumerate(irreps_in):
            if li != lo:
                continue
            d = 2 * li + 1
            key, sub = jax.random.split(key)
            w = jax.random.normal(sub, (mi, mo), dtype=dtype)  # e3nn init: N(0,1)
            pw = 1.0 / math.sqrt(fan_in[j]) if fan_in[j] > 0 else 1.0
            block = pw * jnp.kron(w, jnp.eye(d, dtype=dtype))  # (mi*d, mo*d)
            m = m.at[off_in[i]:off_in[i] + mi * d,
                     off_out[j]:off_out[j] + mo * d].add(block)
    return m


# ----------------------------------------------------------------------------
# Pallas kernel: one node-tile of out = x @ W (W stays resident in VMEM).
# x_ref: (tile_n, din=30), w_ref: (din=30, dout=60), o_ref: (tile_n, dout=60).
# Mosaic pads the K=30 contraction and the 60-lane output internally (VMEM /
# MXU side only — no extra HBM bytes).
# ----------------------------------------------------------------------------
def _linear_kernel(x_ref, w_ref, o_ref):
    o_ref[...] = jnp.dot(
        x_ref[...], w_ref[...], preferred_element_type=jnp.float32
    ).astype(o_ref.dtype)


def pallas_linear(x, dense_w, tile_n=TILE_N):
    """x: [n, din] node features, dense_w: [din, dout] dense e3nn-Linear matrix.

    Returns [n, dout] == x @ dense_w.
    """
    n, din = x.shape
    din_w, dout = dense_w.shape
    assert din == din_w

    # Node tile: multiple of the sublane width, no bigger than needed.
    tile_n = max(SUBLANE, min(tile_n, _round_up(n, SUBLANE)))
    tile_n = _round_up(tile_n, SUBLANE)

    # Partial edge block is safe: each output row depends only on its own
    # input row, so we never pad the node count in HBM.
    grid = (pl.cdiv(n, tile_n),)

    cost = pl.CostEstimate(
        flops=2 * n * din * dout,
        transcendentals=0,
        bytes_accessed=4 * (n * din + din * dout + n * dout),
    )

    out = pl.pallas_call(
        _linear_kernel,
        out_shape=jax.ShapeDtypeStruct((n, dout), x.dtype),
        grid=grid,
        in_specs=[
            pl.BlockSpec((tile_n, din), lambda i: (i, 0)),   # node tile, true K
            pl.BlockSpec((din, dout), lambda i: (0, 0)),     # resident W, true shape
        ],
        out_specs=pl.BlockSpec((tile_n, dout), lambda i: (i, 0)),  # true-width output
        compiler_params=pltpu.CompilerParams(
            dimension_semantics=("parallel",),   # megacore / 2-TC sharding on v7x
            vmem_limit_bytes=32 * 1024 * 1024,
        ),
        cost_estimate=cost,
    )(x, dense_w)
    return out


# ----------------------------------------------------------------------------
# Module-equivalent wrapper: mutates/returns the data dict like the nn.Module.
# ----------------------------------------------------------------------------
class SelfConnectionLinearIntro:
    def __init__(self, irreps_in, irreps_out, key):
        self.irreps_in = irreps_in
        self.irreps_out = irreps_out
        self.dout = _irreps_dim(irreps_out)
        self.dense_w = build_dense_weight(key, irreps_in, irreps_out)

    def __call__(self, data):
        data[KEY_SELF_CONNECTION_TEMP] = pallas_linear(
            data[KEY_NODE_FEATURE], self.dense_w
        )
        return data


if __name__ == "__main__":
    key = jax.random.PRNGKey(0)
    k_x, k_w = jax.random.split(key)

    num_nodes = 32
    din = _irreps_dim(IRREPS_IN)
    x = jax.random.normal(k_x, (num_nodes, din), dtype=jnp.float32)

    module = SelfConnectionLinearIntro(IRREPS_IN, IRREPS_OUT, k_w)
    data = {KEY_NODE_FEATURE: x}
    data = module(data)

    out = jax.block_until_ready(data[KEY_SELF_CONNECTION_TEMP])

    # sanity check against plain-JAX reference of the same dense operator
    ref = x @ module.dense_w
    assert out.shape == (num_nodes, _irreps_dim(IRREPS_OUT))
    assert jnp.allclose(out, ref, atol=1e-5, rtol=1e-5)

    print("KERNEL_OK")
</pallas_src>

<mosaic_0001>
module attributes {stable_mosaic.version = 11 : i64} {
  func.func @_linear_kernel(%arg0: i32, %arg1: memref<32x30xf32, #tpu.memory_space<vmem>>, %arg2: memref<30x60xf32, #tpu.memory_space<vmem>>, %arg3: memref<32x60xf32, #tpu.memory_space<vmem>>) attributes {dimension_semantics = [#tpu.dimension_semantics<parallel>], iteration_bounds = array<i64: 1>, scalar_prefetch = 0 : i64, scratch_operands = 0 : i64, tpu.core_type = #tpu.core_type<tc>, window_params = [{transform_indices = @transform_0, window_bounds = array<i64: 32, 30>}, {pipeline_mode = #tpu.pipeline_mode<synchronous>, transform_indices = @transform_1, window_bounds = array<i64: 30, 60>}, {transform_indices = @transform_2, window_bounds = array<i64: 32, 60>}]} {
    %c0 = arith.constant 0 : index
    %c0_0 = arith.constant 0 : index
    %0 = vector.load %arg1[%c0, %c0_0] : memref<32x30xf32, #tpu.memory_space<vmem>>, vector<32x30xf32>
    %c0_1 = arith.constant 0 : index
    %c0_2 = arith.constant 0 : index
    %1 = vector.load %arg2[%c0_1, %c0_2] : memref<30x60xf32, #tpu.memory_space<vmem>>, vector<30x60xf32>
    %cst = arith.constant dense<0.000000e+00> : vector<32x60xf32>
    %2 = tpu.matmul %0, %1, %cst {dimension_numbers = #tpu.dot_dimension_numbers<[1], [0], [0], [1], [0, 0, 1, 1], [], []>} : vector<32x30xf32>, vector<30x60xf32>, vector<32x60xf32> -> vector<32x60xf32>
    %c0_3 = arith.constant 0 : index
    %c0_4 = arith.constant 0 : index
    %3 = vector.load %arg3[%c0_3, %c0_4] : memref<32x60xf32, #tpu.memory_space<vmem>>, vector<32x60xf32>
    tpu.vector_store %arg3[%c0_3, %c0_4], %2 {strides = array<i32>} : memref<32x60xf32, #tpu.memory_space<vmem>>, vector<32x60xf32>,
    return
  }
  func.func @transform_0(%arg0: i32) -> (i32, i32) {
    %c0_i32 = arith.constant 0 : i32
    %c0_i32_0 = arith.constant 0 : i32
    return %arg0, %c0_i32 : i32, i32
  }
  func.func @transform_1(%arg0: i32) -> (i32, i32) {
    %c0_i32 = arith.constant 0 : i32
    %c0_i32_0 = arith.constant 0 : i32
    %c0_i32_1 = arith.constant 0 : i32
    return %c0_i32, %c0_i32_0 : i32, i32
  }
  func.func @transform_2(%arg0: i32) -> (i32, i32) {
    %c0_i32 = arith.constant 0 : i32
    %c0_i32_0 = arith.constant 0 : i32
    return %arg0, %c0_i32 : i32, i32
  }
}

</mosaic_0001>

<llo_original>
// kernel: tpu_custom_call.1
$region0: #{tpu_custom_call.1}
  #allocation0 [shape = 'u32[]', space=smem, size = 0x4, offset = 0x4, fixed_abs, tag = 'smem constant byte address 0x4 - core index']
  #allocation1 [shape = 'u32[72,128]{1,0:T(1,128)}', space=vmem, size = 0x9000, scoped, tag = 'internal scratch']
  %s0 = inlined_call_operand.hbm [shape: f32[32,30], index: 0, kind: input, shape index: {}]
  %s1 = inlined_call_operand.hbm [shape: f32[30,60], index: 1, kind: input, shape index: {}]
  %s2 = inlined_call_operand.hbm [shape: f32[32,60], index: 2, kind: output, shape index: {}]
  %s3 = sld [smem:[#allocation0]]
  $region26: #{tpu_custom_call.1} parent=0
    _
  %s5 = ssub.s32 1, %s3
  %s6 = scalar_select 0, %s5, %s3
  $region1: #{tpu_custom_call.1} parent=0
    #allocation2 [shape = 'u8[16384]{0}', space=vmem, size = 0x4000, scoped, tag = 'input window, operand 0, single buffered']
    #allocation3 [shape = 's32[1]{0}', space=sflag, size = 0x4, scoped, tag = 'scoped memory for tpu_custom_call.1']
    #allocation4 [shape = 's32[1]{0}', space=sflag, size = 0x4, scoped, tag = 'scoped memory for tpu_custom_call.1']
    #allocation5 [shape = 'u8[16384]{0}', space=vmem, size = 0x4000, scoped, tag = 'input window, operand 1, single buffered']
    #allocation6 [shape = 's32[1]{0}', space=sflag, size = 0x4, scoped, tag = 'scoped memory for tpu_custom_call.1']
    #allocation7 [shape = 'u8[16384]{0}', space=vmem, size = 0x4000, scoped, tag = 'output window, operand 0, single buffered']
    %7 = vsyncpa [#allocation3], 0
    %8 = vsyncpa [#allocation6], 0
    %9 = vsyncpa [#allocation4], 0
    // Predicated region
    $region2: #{tpu_custom_call.1} parent=1 // pred_check
      _
    $region3: #{tpu_custom_call.1} parent=1 // pred_check_branch
      %11 = sbr.rel (0) target = $region5
    $region4: #{tpu_custom_call.1} parent=1 // pred_region
      %13 = vsyncadd [#allocation3], 0
      %s14 = sshll.u32 %s0, 4
      %s15 = int_to_ptr.hbm [resolvable:$true] %s14
      %s16 = sshll.u32 [#allocation2], 4
      %s17 = int_to_ptr.vmem [resolvable:$true] %s16
      %22 = dma.hbm_to_vmem [thread:$0]  %s15, 512, %s17, [#allocation3], 128, 128, 8
    $region5: #{tpu_custom_call.1} parent=1 // pred_fallthru
      _
    // Predicated region
    $region6: #{tpu_custom_call.1} parent=1 // pred_check
      _
    $region7: #{tpu_custom_call.1} parent=1 // pred_check_branch
      %24 = sbr.rel (0) target = $region9
    $region8: #{tpu_custom_call.1} parent=1 // pred_region
      %26 = vsyncadd [#allocation6], 0
      %s27 = sshll.u32 %s1, 4
      %s28 = int_to_ptr.hbm [resolvable:$true] %s27
      %s29 = sshll.u32 [#allocation5], 4
      %s30 = int_to_ptr.vmem [resolvable:$true] %s29
      %35 = dma.hbm_to_vmem [thread:$0]  %s28, 512, %s30, [#allocation6], 128, 128, 8
    $region9: #{tpu_custom_call.1} parent=1 // pred_fallthru
      _
    // Predicated region
    $region10: #{tpu_custom_call.1} parent=1 // pred_check
      _
    $region11: #{tpu_custom_call.1} parent=1 // pred_check_branch
      %37 = sbr.rel (0) target = $region13
    $region12: #{tpu_custom_call.1} parent=1 // pred_region
      %39 = dma.done [#allocation3], 512
    $region13: #{tpu_custom_call.1} parent=1 // pred_fallthru
      _
    // Predicated region
    $region14: #{tpu_custom_call.1} parent=1 // pred_check
      _
    $region15: #{tpu_custom_call.1} parent=1 // pred_check_branch
      %41 = sbr.rel (0) target = $region17
    $region16: #{tpu_custom_call.1} parent=1 // pred_region
      %43 = dma.done [#allocation6], 512
    $region17: #{tpu_custom_call.1} parent=1 // pred_fallthru
      _
    %v44 = vld [vmem:[#allocation2] sm:$0xff]
    %v45 = vld [vmem:[#allocation2 + $0x8] sm:$0xff]
    %v46 = vld [vmem:[#allocation2 + $0x10] sm:$0xff]
    %v47 = vld [vmem:[#allocation2 + $0x18] sm:$0xff]
    %v48 = vld [vmem:[#allocation5] sm:$0xff]
    %v49 = vld [vmem:[#allocation5 + $0x8] sm:$0xff]
    %v50 = vld [vmem:[#allocation5 + $0x10] sm:$0xff]
    %v51 = vld [vmem:[#allocation5 + $0x18] sm:$0x3f]
    %vm52 = vcmask 244736
    %v54 = vsel %vm52, %v44, 0
    %v57 = vsel %vm52, %v45, 0
    %v60 = vsel %vm52, %v46, 0
    %v63 = vsel %vm52, %v47, 0
    %vm65 = vcmask 1045504
    %v67 = vsel %vm65, %v51, 0
    %69 = vmatpush.msra.mxu0 0.0
    %70 = vmatpush.msra.mxu0 0.0
    %71 = vmatpush.msra.mxu0 0.0
    %72 = vmatpush.msra.mxu0 0.0
    %73 = vmatpush.msra.mxu0 0.0
    %74 = vmatpush.msra.mxu0 0.0
    %75 = vmatpush.msra.mxu0 0.0
    %76 = vmatpush.msra.mxu0 0.0
    %77 = vmatpush.msra.mxu0 0.0
    %78 = vmatpush.msra.mxu0 0.0
    %79 = vmatpush.msra.mxu0 0.0
    %80 = vmatpush.msra.mxu0 0.0
    %81 = vmatpush.msra.mxu0 %v67
    %82 = vmatpush.msra.mxu0 %v50
    %83 = vmatpush.msra.mxu0 %v49
    %84 = vmatpush.msra.mxu0 %v48
    %85 = vmatmul.f32.gmra.mxu0 %v54
    %v86 = vpop.f32.mrf.mxu0
    %v87 = vadd.f32 0.0, %v86
    %88 = vmatmul.f32.gmra.mxu0 %v57
    %v89 = vpop.f32.mrf.mxu0
    %v90 = vadd.f32 0.0, %v89
    %91 = vmatmul.f32.gmra.mxu0 %v60
    %v92 = vpop.f32.mrf.mxu0
    %v93 = vadd.f32 0.0, %v92
    %94 = vmatmul.f32.gmra.mxu0 %v63
    %v95 = vpop.f32.mrf.mxu0
    %v96 = vadd.f32 0.0, %v95
    %97 = vdwg.mxu0
    %vm98 = vcmask 490496
    %99 = vst.msk [vmem:[#allocation7] sm:$0xff] %vm98, %v87
    %100 = vst.msk [vmem:[#allocation7 + $0x8] sm:$0xff] %vm98, %v90
    %101 = vst.msk [vmem:[#allocation7 + $0x10] sm:$0xff] %vm98, %v93
    %102 = vst.msk [vmem:[#allocation7 + $0x18] sm:$0xff] %vm98, %v96
    // Predicated region
    $region18: #{tpu_custom_call.1} parent=1 // pred_check
      _
    $region19: #{tpu_custom_call.1} parent=1 // pred_check_branch
      %104 = sbr.rel (0) target = $region21
    $region20: #{tpu_custom_call.1} parent=1 // pred_region
      %106 = vsyncadd [#allocation4], 0
      %s107 = sshll.u32 [#allocation7], 4
      %s108 = int_to_ptr.vmem [resolvable:$true] %s107
      %s109 = sshll.u32 %s2, 4
      %s110 = int_to_ptr.hbm [resolvable:$true] %s109
      %115 = dma.vmem_to_hbm [thread:$0]  %s108, 512, %s110, [#allocation4], 128, 128, 8
    $region21: #{tpu_custom_call.1} parent=1 // pred_fallthru
      _
    // Predicated region
    $region22: #{tpu_custom_call.1} parent=1 // pred_check
      _
    $region23: #{tpu_custom_call.1} parent=1 // pred_check_branch
      %117 = sbr.rel (0) target = $region25
    $region24: #{tpu_custom_call.1} parent=1 // pred_region
      %119 = dma.done [#allocation4], 512
    $region25: #{tpu_custom_call.1} parent=1 // pred_fallthru
      _
    %120 = vsyncpa [#allocation3], 1
    %121 = vsyncpa [#allocation6], 1
    %122 = vsyncpa [#allocation4], 1

</llo_original>
